<compile_context>
chip_gen: v5e
topology: v5e:2x2
jax: 0.10.0
libtpu: 0.0.40
codegen_flags: <defaults>
</compile_context>

<pallas_src>
import functools

import numpy as np
import jax
import jax.numpy as jnp
from jax.experimental import pallas as pl
from jax.experimental.pallas import tpu as pltpu


def _round_up(x, m):
    return (x + m - 1) // m * m


_VMEM_LIMIT = 64 * 1024 * 1024  # v7x-safe scoped-VMEM budget


# ----------------------------------------------------------------------------------
# Pallas kernel 1: stride-1 3x3 conv (2-D or 3-D) as an in-VMEM tap-accumulating matmul
#                  with fused BN scale, bias, LeakyReLU and (optional) residual add.
# ----------------------------------------------------------------------------------

@functools.lru_cache(maxsize=None)
def _make_tap_conv_kernel(plane_offsets, m_out, slope, residual):
    """plane_offsets: tuple (one entry per depth tap / plane) of tuples of static row
    offsets into the spatially-flattened padded plane.  Accumulates all taps in f32,
    adds bias, applies LeakyReLU(slope) and, if `residual`, adds the (bf16) center patch
    projected through an identity weight slice (the last slice of w_ref)."""
    n_planes = len(plane_offsets)
    n_taps = sum(len(o) for o in plane_offsets)
    cp = n_planes // 2                       # center depth plane
    ci = len(plane_offsets[cp]) // 2         # center spatial tap within that plane

    def kernel(*refs):
        plane_refs = refs[:n_planes]
        w_ref, b_ref, o_ref = refs[n_planes], refs[n_planes + 1], refs[n_planes + 2]
        acc = None
        center_patch = None
        t = 0
        for p_idx in range(n_planes):
            x_full = plane_refs[p_idx][0, 0]                       # (Pflat, C) f32 in VMEM
            for li, off in enumerate(plane_offsets[p_idx]):
                patch = x_full[off:off + m_out, :].astype(jnp.bfloat16)
                if residual and p_idx == cp and li == ci:
                    center_patch = patch                           # raw x for the skip path
                contrib = jnp.dot(patch, w_ref[t],
                                  preferred_element_type=jnp.float32)
                acc = contrib if acc is None else acc + contrib
                t += 1
        acc = acc + b_ref[...]                                     # (1, Op) broadcast
        if slope is not None:
            acc = jnp.where(acc >= 0.0, acc, acc * slope)
        if residual:
            # out = x + LeakyReLU(conv(x)); identity tap keeps the output lane-dense.
            acc = acc + jnp.dot(center_patch, w_ref[n_taps],
                                preferred_element_type=jnp.float32)
        o_ref[0, 0] = acc

    return kernel


def _make_plane_map(a):
    def imap(b, dd):
        return (b, dd + a, 0, 0)
    return imap


@functools.partial(jax.jit, static_argnames=("dims", "dilation", "slope", "residual"))
def tap_conv(x, w, scale, bias, *, dims, dilation=1, slope=None, residual=False):
    """Stride-1 'same' k=3 conv (2-D: x (B,H,W,C); 3-D: x (B,D,H,W,C)), channels-last.

    The padded volume is flattened per (batch, depth-plane) to (Pflat, C); every kernel
    tap is a static row offset into that plane, so no im2col / transpose is materialized.
    BN scale is folded into the bf16 weights; bias (+ LeakyReLU, + residual) fused in the
    epilogue.
    """
    if dims == 2:
        B, H, W, C = x.shape
        x5 = x[:, None]
        D, kd, pad_d = 1, 1, 0
    else:
        B, D, H, W, C = x.shape
        x5 = x
        kd, pad_d = 3, 1

    d = dilation
    pad = d                                   # k=3 'same' padding (pad == dilation)
    O = w.shape[0]
    Op = _round_up(O, 128)                    # lane-dense output channels
    Hp, Wp = H + 2 * pad, W + 2 * pad
    Dp = D + 2 * pad_d
    m_out = H * Wp                            # rows incl. (discarded) junk columns
    p_flat = _round_up(Hp * Wp + 2 * d, 8)

    xp = jnp.pad(x5.astype(jnp.float32),
                 ((0, 0), (pad_d, pad_d), (pad, pad), (pad, pad), (0, 0)))
    flat = xp.reshape(B, Dp, Hp * Wp, C)
    flat = jnp.pad(flat, ((0, 0), (0, 0), (0, p_flat - Hp * Wp), (0, 0)))

    # weights: torch (O, C, [kd,] 3, 3) -> tap-major (T, C, Op), BN scale folded in
    if dims == 2:
        w_t = jnp.transpose(w, (2, 3, 1, 0)).reshape(9, C, O)
    else:
        w_t = jnp.transpose(w, (2, 3, 4, 1, 0)).reshape(27, C, O)
    w_t = jnp.pad(w_t * scale[None, None, :], ((0, 0), (0, 0), (0, Op - O)))
    if residual:
        assert O == C, "residual fusion requires matching in/out channels"
        eye = jnp.pad(jnp.eye(C, dtype=jnp.float32), ((0, 0), (0, Op - O)))
        w_t = jnp.concatenate([w_t, eye[None]], axis=0)           # extra identity tap
    w_t = w_t.astype(jnp.bfloat16)
    b_t = jnp.pad(bias.reshape(1, O).astype(jnp.float32), ((0, 0), (0, Op - O)))
    T_total = kd * 9 + (1 if residual else 0)

    offs = tuple(tuple(i * d * Wp + j * d for i in range(3) for j in range(3))
                 for _ in range(kd))
    kernel = _make_tap_conv_kernel(offs, m_out, slope, residual)

    plane_specs = [pl.BlockSpec((1, 1, p_flat, C), _make_plane_map(a)) for a in range(kd)]
    out = pl.pallas_call(
        kernel,
        out_shape=jax.ShapeDtypeStruct((B, D, m_out, Op), jnp.float32),
        grid_spec=pltpu.PrefetchScalarGridSpec(
            num_scalar_prefetch=0,
            grid=(B, D),
            in_specs=plane_specs + [
                pl.BlockSpec((T_total, C, Op), lambda b, dd: (0, 0, 0)),
                pl.BlockSpec((1, Op), lambda b, dd: (0, 0)),
            ],
            out_specs=pl.BlockSpec((1, 1, m_out, Op), lambda b, dd: (b, dd, 0, 0)),
        ),
        compiler_params=pltpu.CompilerParams(
            dimension_semantics=("parallel", "parallel"),
            vmem_limit_bytes=_VMEM_LIMIT),
    )(*([flat] * kd), w_t, b_t)

    out = out.reshape(B, D, H, Wp, Op)[:, :, :, :W, :O]
    if dims == 2:
        out = out[:, 0]
    return out


def _c2(x, p, d=1, slope=None, residual=False):
    return tap_conv(x, p["w"], p["scale"], p["bias"], dims=2, dilation=d,
                    slope=slope, residual=residual)


def _c3(x, p, slope=None):
    return tap_conv(x, p["w"], p["scale"], p["bias"], dims=3, dilation=1, slope=slope)


# ----------------------------------------------------------------------------------
# Pallas kernel 2: fused bf16 matmul + bias (used only for the two stride-2 k=5 convs)
# ----------------------------------------------------------------------------------

@functools.lru_cache(maxsize=None)
def _make_mm_kernel(slope):
    def kernel(a_ref, b_ref, c_ref, o_ref):
        acc = jnp.dot(a_ref[...], b_ref[...], preferred_element_type=jnp.float32)
        acc = acc + c_ref[...]
        if slope is not None:
            acc = jnp.where(acc >= 0.0, acc, acc * slope)
        o_ref[...] = acc
    return kernel


@functools.partial(jax.jit, static_argnames=("slope",))
def matmul_bias_act(A, Bm, bias, slope=None):
    M, K = A.shape
    N = Bm.shape[1]
    Np = _round_up(N, 128)
    tm = min(512, _round_up(M, 8))
    Mp = _round_up(M, tm)
    A_p = jnp.pad(A, ((0, Mp - M), (0, 0))).astype(jnp.bfloat16)
    B_p = jnp.pad(Bm, ((0, 0), (0, Np - N))).astype(jnp.bfloat16)
    b_p = jnp.pad(bias.reshape(1, N).astype(jnp.float32), ((0, 0), (0, Np - N)))

    out = pl.pallas_call(
        _make_mm_kernel(slope),
        out_shape=jax.ShapeDtypeStruct((Mp, Np), jnp.float32),
        grid_spec=pltpu.PrefetchScalarGridSpec(
            num_scalar_prefetch=0,
            grid=(Mp // tm,),
            in_specs=[
                pl.BlockSpec((tm, K), lambda i: (i, 0)),
                pl.BlockSpec((K, Np), lambda i: (0, 0)),
                pl.BlockSpec((1, Np), lambda i: (0, 0)),
            ],
            out_specs=pl.BlockSpec((tm, Np), lambda i: (i, 0)),
        ),
        compiler_params=pltpu.CompilerParams(
            dimension_semantics=("parallel",),
            vmem_limit_bytes=_VMEM_LIMIT),
    )(A_p, B_p, b_p)
    return out[:M, :N]


@functools.partial(jax.jit, static_argnames=("stride", "slope"))
def conv2d_im2col(x, w, scale, bias, *, stride, slope=None):
    """Strided conv (k=5, s=2) via channels-last tap-major im2col (no transposes)."""
    B, H, W, C = x.shape
    O, _, kh, kw = w.shape
    pad = kh // 2
    Ho = (H + 2 * pad - kh) // stride + 1
    Wo = (W + 2 * pad - kw) // stride + 1
    xp = jnp.pad(x.astype(jnp.float32), ((0, 0), (pad, pad), (pad, pad), (0, 0)))
    taps = []
    for i in range(kh):
        for j in range(kw):
            taps.append(xp[:, i:i + stride * (Ho - 1) + 1:stride,
                              j:j + stride * (Wo - 1) + 1:stride, :])
    A = jnp.stack(taps, axis=3).reshape(B * Ho * Wo, kh * kw * C)
    w_t = jnp.transpose(w, (2, 3, 1, 0)).reshape(kh * kw * C, O) * scale[None, :]
    out = matmul_bias_act(A, w_t, bias, slope=slope)
    return out.reshape(B, Ho, Wo, O)


# ----------------------------------------------------------------------------------
# Pallas kernel 3: softmax-over-depth expectation -> inverse depth (tiled over pixels)
# ----------------------------------------------------------------------------------

def _softmax_kernel(x_ref, r_ref, o_ref):
    x = x_ref[0]                                       # (R, tp)
    m = jnp.max(x, axis=0, keepdims=True)
    e = jnp.exp(x - m)
    denom = jnp.sum(e, axis=0, keepdims=True)
    wsum = jnp.sum(e * r_ref[0], axis=0, keepdims=True)
    # 1 / (wsum / denom) == denom * (1 / wsum)   (single EUP reciprocal)
    o_ref[0] = denom * pl.reciprocal(wsum, approx=True)


@jax.jit
def softmax_expectation_inv(cost, r_range):
    """softmax over depth, expectation with r_range, reciprocal -> (B, H, W, 1)."""
    B, R, H, W = cost.shape
    P = H * W
    tp = min(512, _round_up(P, 128))
    Pp = _round_up(P, tp)
    x = jnp.pad(cost.reshape(B, R, P).astype(jnp.float32), ((0, 0), (0, 0), (0, Pp - P)))
    r = r_range.reshape(1, R, 1).astype(jnp.float32)
    out = pl.pallas_call(
        _softmax_kernel,
        out_shape=jax.ShapeDtypeStruct((B, 1, Pp), jnp.float32),
        grid_spec=pltpu.PrefetchScalarGridSpec(
            num_scalar_prefetch=0,
            grid=(B, Pp // tp),
            in_specs=[
                pl.BlockSpec((1, R, tp), lambda b, p: (b, 0, p)),
                pl.BlockSpec((1, R, 1), lambda b, p: (0, 0, 0)),
            ],
            out_specs=pl.BlockSpec((1, 1, tp), lambda b, p: (b, 0, p)),
        ),
        compiler_params=pltpu.CompilerParams(
            dimension_semantics=("parallel", "parallel"),
            vmem_limit_bytes=_VMEM_LIMIT),
    )(x, r)
    return out[:, 0, :P].reshape(B, H, W, 1)


# ----------------------------------------------------------------------------------
# JAX glue: bilinear resize (align_corners=False) and grid_sample (zero padding)
# ----------------------------------------------------------------------------------
# TODO(synk): bilinear resize / grid_sample are data-dependent gathers; kept in JAX glue.

def resize_bilinear_cl(x, Ho, Wo):
    """x: (..., H, W, C) channels-last; resize the two spatial axes."""
    H, W = x.shape[-3], x.shape[-2]
    if H == Ho and W == Wo:
        return x
    ys = jnp.maximum((jnp.arange(Ho, dtype=jnp.float32) + 0.5) * (H / Ho) - 0.5, 0.0)
    y0 = jnp.floor(ys).astype(jnp.int32)
    y1 = jnp.minimum(y0 + 1, H - 1)
    wy = ys - y0.astype(jnp.float32)
    xs = jnp.maximum((jnp.arange(Wo, dtype=jnp.float32) + 0.5) * (W / Wo) - 0.5, 0.0)
    x0 = jnp.floor(xs).astype(jnp.int32)
    x1 = jnp.minimum(x0 + 1, W - 1)
    wx = xs - x0.astype(jnp.float32)
    r = (jnp.take(x, y0, axis=-3) * (1.0 - wy)[:, None, None] +
         jnp.take(x, y1, axis=-3) * wy[:, None, None])
    return (jnp.take(r, x0, axis=-2) * (1.0 - wx)[:, None] +
            jnp.take(r, x1, axis=-2) * wx[:, None])


def grid_sample_cl_zeros(img, ix, iy):
    """img: (B, Hin, Win, C); ix/iy: (R, H, W) unnormalized coords -> (B, R, H, W, C)."""
    B, Hin, Win, C = img.shape
    x0f, y0f = jnp.floor(ix), jnp.floor(iy)
    x1f, y1f = x0f + 1.0, y0f + 1.0
    wx1, wy1 = ix - x0f, iy - y0f
    wx0, wy0 = 1.0 - wx1, 1.0 - wy1
    img_flat = img.reshape(B, Hin * Win, C)

    def tap(xf, yf, wx, wy):
        valid = ((xf >= 0) & (xf <= Win - 1) & (yf >= 0) & (yf <= Hin - 1)).astype(img.dtype)
        xi = jnp.clip(xf, 0, Win - 1).astype(jnp.int32)
        yi = jnp.clip(yf, 0, Hin - 1).astype(jnp.int32)
        idx = (yi * Win + xi).reshape(-1)
        vals = jnp.take(img_flat, idx, axis=1).reshape((B,) + ix.shape + (C,))
        return vals * (wx * wy * valid)[None, ..., None]

    return (tap(x0f, y0f, wx0, wy0) + tap(x1f, y0f, wx1, wy0) +
            tap(x0f, y1f, wx0, wy1) + tap(x1f, y1f, wx1, wy1))


# ----------------------------------------------------------------------------------
# Synthetic fisheye camera (original camera classes are not part of the module)
# ----------------------------------------------------------------------------------
# TODO(synk): ref/target camera models are not provided with the module; a deterministic
# synthetic pinhole-style camera keeps the plane-sweep geometry well defined.

class SyntheticFisheyeCam:
    def __init__(self, H, W, extrinsic):
        self.H, self.W = H, W
        self._E = jnp.asarray(extrinsic, jnp.float32)
        self.fx = self.fy = 0.5 * W
        self.cx = (W - 1) / 2.0
        self.cy = (H - 1) / 2.0

    def get_whole_pts(self):
        v, u = jnp.meshgrid(jnp.arange(self.H, dtype=jnp.float32),
                            jnp.arange(self.W, dtype=jnp.float32), indexing="ij")
        rays = jnp.stack([(u - self.cx) / self.fx,
                          (v - self.cy) / self.fy,
                          jnp.ones_like(u)], axis=0).reshape(3, -1)
        return rays / jnp.linalg.norm(rays, axis=0, keepdims=True)   # (3, H*W)

    def get_extrinsic(self):
        return self._E

    def world2pixel(self, pts):
        x, y, z = pts[0], pts[1], jnp.maximum(pts[2], 1e-6)
        return jnp.stack([x / z * self.fx + self.cx, y / z * self.fy + self.cy], axis=0)


# ----------------------------------------------------------------------------------
# Parameters (deterministic init; BatchNorm eval-mode folded to per-channel scale/bias)
# ----------------------------------------------------------------------------------

class _KeyGen:
    def __init__(self, seed):
        self._key = jax.random.PRNGKey(seed)

    def __call__(self):
        self._key, sub = jax.random.split(self._key)
        return sub


def _conv_params(kg, out_c, in_c, ks, with_bias):
    fan_in = in_c * int(np.prod(ks))
    w = jax.random.normal(kg(), (out_c, in_c) + tuple(ks), jnp.float32) * (0.5 / np.sqrt(fan_in))
    if with_bias:
        b = jax.random.normal(kg(), (out_c,), jnp.float32) * 0.01
    else:
        b = jnp.zeros((out_c,), jnp.float32)   # BN beta=0 / running_mean=0
    # BN eval-mode (gamma=1, running_var=1) folds to per-channel scale = 1.
    return {"w": w, "scale": jnp.ones((out_c,), jnp.float32), "bias": b}


def init_params(seed=0, num_features=34):
    kg = _KeyGen(seed)
    convbn2 = lambda ic, oc, k: _conv_params(kg, oc, ic, (k, k), with_bias=False)
    conv2 = lambda ic, oc, k: _conv_params(kg, oc, ic, (k, k), with_bias=True)
    convbn3 = lambda ic, oc, k: _conv_params(kg, oc, ic, (k, k, k), with_bias=False)
    conv3 = lambda ic, oc, k: _conv_params(kg, oc, ic, (k, k, k), with_bias=True)
    nf = num_features
    return {
        "fe": {
            "down": [conv2(3, nf, 5), conv2(nf, nf, 5)],
            "res": [convbn2(nf, nf, 3) for _ in range(6)],
            "alone": conv2(nf, nf, 3),
        },
        "filter3d": [convbn3(nf, nf, 3) for _ in range(7)],
        "conv3d_alone": conv3(nf, 1, 3),
        "ear": {
            "edge_in": convbn2(4, 32, 3),
            "edge_filter": [convbn2(32, 32, 3) for _ in range(5)],
            "edge_out": conv2(32, 1, 3),
            "feat": convbn2(2, 32, 3),
            "astrous": [convbn2(32, 32, 3) for _ in range(7)],
            "out": conv2(32, 1, 3),
        },
    }


# ----------------------------------------------------------------------------------
# Sub-network forwards (all channels-last)
# ----------------------------------------------------------------------------------

def feature_extractor_forward(fe, img_nhwc):
    out = img_nhwc
    for p in fe["down"]:                               # Conv2d(k=5, s=2, p=2), no activation
        out = conv2d_im2col(out, p["w"], p["scale"], p["bias"], stride=2, slope=None)
    for p in fe["res"]:                                # BasicBlock: x + LeakyReLU(BN(conv(x)))
        out = _c2(out, p, d=1, slope=0.2, residual=True)
    return _c2(out, fe["alone"], d=1, slope=None)


def edge_aware_refinement(p, low_disp, rgb):
    B, H, W, _ = rgb.shape
    twice = resize_bilinear_cl(low_disp, H, W)                       # F.interpolate bilinear
    e = _c2(jnp.concatenate([rgb, twice], axis=-1), p["edge_in"], d=1, slope=0.2)
    for blk in p["edge_filter"]:
        e = _c2(e, blk, d=1, slope=0.2, residual=True)
    edge_map = _c2(e, p["edge_out"], d=1, slope=None)
    out = _c2(jnp.concatenate([twice, edge_map], axis=-1), p["feat"], d=1, slope=0.2)
    for blk, di in zip(p["astrous"], [1, 2, 3, 4, 3, 2, 1]):
        out = _c2(out, blk, d=di, slope=0.2, residual=True)
    res = _c2(out, p["out"], d=1, slope=None)
    return jnp.maximum(jnp.squeeze(twice + res * 0.01, axis=-1), 0.0)   # ReLU, (B,H,W)


def depth_estimator_forward(params, cams, img_list, r_min, r_max, R,
                            fisheye_res_y, fisheye_res_x):
    B = img_list[0].shape[0]
    r_range = 1.0 / jnp.flip(jnp.linspace(1.0 / r_max, 1.0 / r_min, R).astype(jnp.float32))

    # note python precedence: img ** 1 / 2.2 == img / 2.2 ; inputs stay NHWC
    feature_list = [feature_extractor_forward(params["fe"], img / 2.2) for img in img_list]

    high_resolution_pred = []
    for (i, j) in [(0, 1)]:
        ref_cam, tgt_cam = cams[i], cams[j]
        norm_pts = ref_cam.get_whole_pts()[:, :, None]                    # (3, H*W, 1)
        sweeping = (norm_pts * r_range[None, None, :]).reshape(3, -1)     # (3, H*W*R)
        pts = jnp.concatenate([sweeping, jnp.ones((1, sweeping.shape[1]), jnp.float32)], axis=0)
        world = ref_cam.get_extrinsic() @ pts
        world = world / world[-1]
        world = jnp.linalg.inv(tgt_cam.get_extrinsic()) @ world
        world = (world / world[-1])[:3]
        uv = tgt_cam.world2pixel(world)
        H, W = fisheye_res_y, fisheye_res_x
        u = uv[0].reshape(H, W, R)
        v = uv[1].reshape(H, W, R)

        feat_j = feature_list[j]                                          # (B, Hf, Wf, C)
        Hf, Wf, C = feat_j.shape[1], feat_j.shape[2], feat_j.shape[3]
        # grid_sample(target, 2*grid - 1, align_corners=False) -> unnormalized coords
        ix = jnp.transpose(u / W, (2, 0, 1)) * Wf - 0.5                   # (R, H, W)
        iy = jnp.transpose(v / H, (2, 0, 1)) * Hf - 0.5
        # z grid coord is -1 on a depth-1 volume with zero padding -> trilinear keeps only
        # the valid slice with weight 0.5.
        intensity = 0.5 * grid_sample_cl_zeros(feat_j, ix, iy)            # (B, R, H, W, C)
        intensity = resize_bilinear_cl(intensity, Hf, Wf)                 # (B, R, Hf, Wf, C)

        # |src - warped| cost volume: fused by XLA into the glue feeding the first
        # filter3d layer (no standalone abs-diff kernel).
        cost_volume = jnp.abs(feature_list[i][:, None] - intensity)       # (B, R, Hf, Wf, C)

        for p in params["filter3d"]:
            cost_volume = _c3(cost_volume, p, slope=0.2)
        cvf = _c3(cost_volume, params["conv3d_alone"], slope=None)[..., 0]  # (B, R, Hf, Wf)

        inv_depth_pred = softmax_expectation_inv(cvf, r_range)            # (B, Hf, Wf, 1)

        result = edge_aware_refinement(params["ear"], inv_depth_pred, img_list[i])
        high_resolution_pred.append(result)
    return high_resolution_pred


# TODO(synk): the O=1 heads (edge_out, ear.out, conv3d_alone) still use the MXU dot with a
# 128-padded lane axis; a VPU multiply-and-reduce over K would avoid the wasted lanes.

# ----------------------------------------------------------------------------------

if __name__ == "__main__":
    B, H, W, R = 2, 16, 16, 8
    r_min, r_max = 1.0, 10.0

    base = jax.random.PRNGKey(0)
    k_img0, k_img1 = jax.random.split(base)
    img0 = jax.random.uniform(k_img0, (B, H, W, 3), jnp.float32)   # NHWC, like img_list
    img1 = jax.random.uniform(k_img1, (B, H, W, 3), jnp.float32)

    params = init_params(seed=0)
    E0 = jnp.eye(4, dtype=jnp.float32)
    E1 = jnp.eye(4, dtype=jnp.float32).at[0, 3].set(0.2)
    cams = [SyntheticFisheyeCam(H, W, E0), SyntheticFisheyeCam(H, W, E1)]

    # Whole-forward jit: all XLA glue between Pallas kernels fuses; cams captured as consts.
    fwd = jax.jit(lambda p, i0, i1: depth_estimator_forward(
        p, cams, [i0, i1], r_min=r_min, r_max=r_max, R=R,
        fisheye_res_y=H, fisheye_res_x=W))

    preds = fwd(params, img0, img1)
    out = jax.block_until_ready(preds[0])
    assert out.shape == (B, H, W), out.shape
    assert bool(jnp.all(jnp.isfinite(out)))
    print("KERNEL_OK")
</pallas_src>

<mosaic_0001>
module attributes {stable_mosaic.version = 11 : i64} {
  func.func @kernel(%arg0: i32, %arg1: memref<128x75xbf16, #tpu.memory_space<vmem>>, %arg2: memref<75x128xbf16, #tpu.memory_space<vmem>>, %arg3: memref<1x128xf32, #tpu.memory_space<vmem>>, %arg4: memref<128x128xf32, #tpu.memory_space<vmem>>) attributes {dimension_semantics = [#tpu.dimension_semantics<parallel>], iteration_bounds = array<i64: 1>, scalar_prefetch = 0 : i64, scratch_operands = 0 : i64, tpu.core_type = #tpu.core_type<tc>, window_params = [{transform_indices = @transform_0, window_bounds = array<i64: 128, 75>}, {pipeline_mode = #tpu.pipeline_mode<synchronous>, transform_indices = @transform_1, window_bounds = array<i64: 75, 128>}, {pipeline_mode = #tpu.pipeline_mode<synchronous>, transform_indices = @transform_2, window_bounds = array<i64: 1, 128>}, {transform_indices = @transform_3, window_bounds = array<i64: 128, 128>}]} {
    %c0 = arith.constant 0 : index
    %c0_0 = arith.constant 0 : index
    %0 = vector.load %arg1[%c0, %c0_0] : memref<128x75xbf16, #tpu.memory_space<vmem>>, vector<128x75xbf16>
    %c0_1 = arith.constant 0 : index
    %c0_2 = arith.constant 0 : index
    %1 = vector.load %arg2[%c0_1, %c0_2] : memref<75x128xbf16, #tpu.memory_space<vmem>>, vector<75x128xbf16>
    %cst = arith.constant dense<0.000000e+00> : vector<128x128xf32>
    %2 = tpu.matmul %0, %1, %cst {dimension_numbers = #tpu.dot_dimension_numbers<[1], [0], [0], [1], [0, 0, 1, 1], [], []>} : vector<128x75xbf16>, vector<75x128xbf16>, vector<128x128xf32> -> vector<128x128xf32>
    %c0_3 = arith.constant 0 : index
    %c0_4 = arith.constant 0 : index
    %3 = vector.load %arg3[%c0_3, %c0_4] : memref<1x128xf32, #tpu.memory_space<vmem>>, vector<1x128xf32>
    %4 = vector.broadcast %3 : vector<1x128xf32> to vector<128x128xf32>
    %5 = arith.addf %2, %4 : vector<128x128xf32>
    %c0_5 = arith.constant 0 : index
    %c0_6 = arith.constant 0 : index
    %6 = vector.load %arg4[%c0_5, %c0_6] : memref<128x128xf32, #tpu.memory_space<vmem>>, vector<128x128xf32>
    tpu.vector_store %arg4[%c0_5, %c0_6], %5 {strides = array<i32>} : memref<128x128xf32, #tpu.memory_space<vmem>>, vector<128x128xf32>,
    return
  }
  func.func @transform_0(%arg0: i32) -> (i32, i32) {
    %c0_i32 = arith.constant 0 : i32
    %c0_i32_0 = arith.constant 0 : i32
    return %arg0, %c0_i32 : i32, i32
  }
  func.func @transform_1(%arg0: i32) -> (i32, i32) {
    %c0_i32 = arith.constant 0 : i32
    %c0_i32_0 = arith.constant 0 : i32
    %c0_i32_1 = arith.constant 0 : i32
    return %c0_i32, %c0_i32_0 : i32, i32
  }
  func.func @transform_2(%arg0: i32) -> (i32, i32) {
    %c0_i32 = arith.constant 0 : i32
    %c0_i32_0 = arith.constant 0 : i32
    %c0_i32_1 = arith.constant 0 : i32
    return %c0_i32, %c0_i32_0 : i32, i32
  }
  func.func @transform_3(%arg0: i32) -> (i32, i32) {
    %c0_i32 = arith.constant 0 : i32
    %c0_i32_0 = arith.constant 0 : i32
    return %arg0, %c0_i32 : i32, i32
  }
}

</mosaic_0001>

<llo_original>
// kernel: matmul_bias_act.1
$region0: #{matmul_bias_act.1}
  #allocation0 [shape = 'u32[]', space=smem, size = 0x4, offset = 0x4, fixed_abs, tag = 'smem constant byte address 0x4 - core index']
  #allocation1 [shape = 'u32[72,128]{1,0:T(1,128)}', space=vmem, size = 0x9000, scoped, tag = 'internal scratch']
  %s0 = inlined_call_operand.vmem [shape: bf16[128,75], index: 0, kind: input, shape index: {}]
  %s1 = inlined_call_operand.vmem [shape: bf16[75,128], index: 1, kind: input, shape index: {}]
  %s2 = inlined_call_operand.vmem [shape: f32[1,128], index: 2, kind: input, shape index: {}]
  %s3 = inlined_call_operand.vmem [shape: f32[128,128], index: 3, kind: output, shape index: {}]
  %s4 = sld [smem:[#allocation0]]
  $region22: #{matmul_bias_act.1} parent=0
    _
  %s6 = ssub.s32 1, %s4
  %s7 = scalar_select 0, %s6, %s4
  // Predicated region
  $region2: #{matmul_bias_act.1} parent=0 // pred_check
    _
  $region3: #{matmul_bias_act.1} parent=0 // pred_check_branch
    %9 = sbr.rel (0) target = $region5
  $region4: #{matmul_bias_act.1} parent=0 // pred_region
    _
  $region5: #{matmul_bias_act.1} parent=0 // pred_fallthru
    _
  // Predicated region
  $region6: #{matmul_bias_act.1} parent=0 // pred_check
    _
  $region7: #{matmul_bias_act.1} parent=0 // pred_check_branch
    %11 = sbr.rel (0) target = $region9
  $region8: #{matmul_bias_act.1} parent=0 // pred_region
    _
  $region9: #{matmul_bias_act.1} parent=0 // pred_fallthru
    _
  // Predicated region
  $region10: #{matmul_bias_act.1} parent=0 // pred_check
    _
  $region11: #{matmul_bias_act.1} parent=0 // pred_check_branch
    %13 = sbr.rel (0) target = $region13
  $region12: #{matmul_bias_act.1} parent=0 // pred_region
    _
  $region13: #{matmul_bias_act.1} parent=0 // pred_fallthru
    _
  %v15 = vld [vmem:[%s0] sm:$0xf]
  %v16 = vld [vmem:[%s0 + $0x4] sm:$0xf]
  %v17 = vld [vmem:[%s0 + $0x8] sm:$0xf]
  %v18 = vld [vmem:[%s0 + $0xc] sm:$0xf]
  %v19 = vld [vmem:[%s0 + $0x10] sm:$0xf]
  %v20 = vld [vmem:[%s0 + $0x14] sm:$0xf]
  %v21 = vld [vmem:[%s0 + $0x18] sm:$0xf]
  %v22 = vld [vmem:[%s0 + $0x1c] sm:$0xf]
  %v23 = vld [vmem:[%s0 + $0x20] sm:$0xf]
  %v24 = vld [vmem:[%s0 + $0x24] sm:$0xf]
  %v25 = vld [vmem:[%s0 + $0x28] sm:$0xf]
  %v26 = vld [vmem:[%s0 + $0x2c] sm:$0xf]
  %v27 = vld [vmem:[%s0 + $0x30] sm:$0xf]
  %v28 = vld [vmem:[%s0 + $0x34] sm:$0xf]
  %v29 = vld [vmem:[%s0 + $0x38] sm:$0xf]
  %v30 = vld [vmem:[%s0 + $0x3c] sm:$0xf]
  %v31 = vld [vmem:[%s1] sm:$0xf]
  %v32 = vld [vmem:[%s1 + $0x4] sm:$0xf]
  %v33 = vld [vmem:[%s1 + $0x8] sm:$0xf]
  %v34 = vld [vmem:[%s1 + $0xc] sm:$0xf]
  %v35 = vld [vmem:[%s1 + $0x10] sm:$0xf]
  %v36 = vld [vmem:[%s1 + $0x14] sm:$0xf]
  %v37 = vld [vmem:[%s1 + $0x18] sm:$0xf]
  %v38 = vld [vmem:[%s1 + $0x1c] sm:$0xf]
  %v39 = vld [vmem:[%s1 + $0x20] sm:$0xf]
  %v40 = vld [vmem:[%s1 + $0x24] sm:$0x3]
  %v41 = vld [vmem:[%s2] sm:$0x1]
  %v43 = vperm.slane %v41, 0
  %v61 = vunpack.c.l.b16 %v15
  %v62 = vunpack.c.l.b16 %v16
  %v63 = vunpack.c.l.b16 %v17
  %v64 = vunpack.c.l.b16 %v18
  %v65 = vunpack.c.l.b16 %v19
  %v66 = vunpack.c.l.b16 %v20
  %v67 = vunpack.c.l.b16 %v21
  %v68 = vunpack.c.l.b16 %v22
  %v69 = vunpack.c.l.b16 %v23
  %v70 = vunpack.c.l.b16 %v24
  %v71 = vunpack.c.l.b16 %v25
  %v72 = vunpack.c.l.b16 %v26
  %v73 = vunpack.c.l.b16 %v27
  %v74 = vunpack.c.l.b16 %v28
  %v75 = vunpack.c.l.b16 %v29
  %v76 = vunpack.c.l.b16 %v30
  %v77 = vpack.c.b16 %v62, %v61
  %v78 = vpack.c.b16 %v64, %v63
  %v79 = vpack.c.b16 %v66, %v65
  %v80 = vpack.c.b16 %v68, %v67
  %v81 = vpack.c.b16 %v70, %v69
  %v82 = vpack.c.b16 %v72, %v71
  %v83 = vpack.c.b16 %v74, %v73
  %v84 = vpack.c.b16 %v76, %v75
  %v95 = vunpack.c.l.b16 %v31
  %v96 = vunpack.c.l.b16 %v32
  %v97 = vunpack.c.l.b16 %v33
  %v98 = vunpack.c.l.b16 %v34
  %v99 = vunpack.c.l.b16 %v35
  %v100 = vunpack.c.l.b16 %v36
  %v101 = vunpack.c.l.b16 %v37
  %v102 = vunpack.c.l.b16 %v38
  %v103 = vunpack.c.l.b16 %v39
  %v104 = vunpack.c.l.b16 %v40
  %v105 = vpack.c.b16 %v96, %v95
  %v106 = vpack.c.b16 %v98, %v97
  %v107 = vpack.c.b16 %v100, %v99
  %v108 = vpack.c.b16 %v102, %v101
  %v109 = vpack.c.b16 %v104, %v103
  %vm114 = vcmask 613376
  %v116 = vsel %vm114, %v77, 0
  %v119 = vsel %vm114, %v78, 0
  %v122 = vsel %vm114, %v79, 0
  %v125 = vsel %vm114, %v80, 0
  %v128 = vsel %vm114, %v81, 0
  %v131 = vsel %vm114, %v82, 0
  %v134 = vsel %vm114, %v83, 0
  %v137 = vsel %vm114, %v84, 0
  %vm139 = vcmask 1044480
  %vm140 = vcmask 1045504
  %v141 = vsel %vm139, 4294967295, 65535
  %v142 = vsel %vm140, %v141, 0
  %v144 = vand.u32 %v109, %v142
  %146 = vmatpush.bf16.msra.mxu0 0
  %147 = vmatpush.bf16.msra.mxu0 0
  %148 = vmatpush.bf16.msra.mxu0 0
  %149 = vmatpush.bf16.msra.mxu0 %v144
  %150 = vmatpush.bf16.msra.mxu0 %v108
  %151 = vmatpush.bf16.msra.mxu0 %v107
  %152 = vmatpush.bf16.msra.mxu0 %v106
  %153 = vmatpush.bf16.msra.mxu0 %v105
  %154 = vmatmul.bf16.gmra.mxu0 %v116
  %v155 = vpop.f32.mrf.mxu0
  %v156 = vadd.f32 %v43, %v155
  %v157 = vpop.f32.mrf.mxu0
  %v158 = vadd.f32 %v43, %v157
  %159 = vmatmul.bf16.gmra.mxu0 %v119
  %v160 = vpop.f32.mrf.mxu0
  %v161 = vadd.f32 %v43, %v160
  %v162 = vpop.f32.mrf.mxu0
  %v163 = vadd.f32 %v43, %v162
  %164 = vmatmul.bf16.gmra.mxu0 %v122
  %v165 = vpop.f32.mrf.mxu0
  %v166 = vadd.f32 %v43, %v165
  %v167 = vpop.f32.mrf.mxu0
  %v168 = vadd.f32 %v43, %v167
  %169 = vmatmul.bf16.gmra.mxu0 %v125
  %v170 = vpop.f32.mrf.mxu0
  %v171 = vadd.f32 %v43, %v170
  %v172 = vpop.f32.mrf.mxu0
  %v173 = vadd.f32 %v43, %v172
  %174 = vmatmul.bf16.gmra.mxu0 %v128
  %v175 = vpop.f32.mrf.mxu0
  %v176 = vadd.f32 %v43, %v175
  %v177 = vpop.f32.mrf.mxu0
  %v178 = vadd.f32 %v43, %v177
  %179 = vmatmul.bf16.gmra.mxu0 %v131
  %v180 = vpop.f32.mrf.mxu0
  %v181 = vadd.f32 %v43, %v180
  %v182 = vpop.f32.mrf.mxu0
  %v183 = vadd.f32 %v43, %v182
  %184 = vmatmul.bf16.gmra.mxu0 %v134
  %v185 = vpop.f32.mrf.mxu0
  %v186 = vadd.f32 %v43, %v185
  %v187 = vpop.f32.mrf.mxu0
  %v188 = vadd.f32 %v43, %v187
  %189 = vmatmul.bf16.gmra.mxu0 %v137
  %v190 = vpop.f32.mrf.mxu0
  %v191 = vadd.f32 %v43, %v190
  %v192 = vpop.f32.mrf.mxu0
  %v193 = vadd.f32 %v43, %v192
  %194 = vdwg.mxu0
  %195 = vst [vmem:[%s3] sm:$0xff] %v156
  %196 = vst [vmem:[%s3 + $0x8] sm:$0xff] %v158
  %197 = vst [vmem:[%s3 + $0x10] sm:$0xff] %v161
  %198 = vst [vmem:[%s3 + $0x18] sm:$0xff] %v163
  %199 = vst [vmem:[%s3 + $0x20] sm:$0xff] %v166
  %200 = vst [vmem:[%s3 + $0x28] sm:$0xff] %v168
  %201 = vst [vmem:[%s3 + $0x30] sm:$0xff] %v171
  %202 = vst [vmem:[%s3 + $0x38] sm:$0xff] %v173
  %203 = vst [vmem:[%s3 + $0x40] sm:$0xff] %v176
  %204 = vst [vmem:[%s3 + $0x48] sm:$0xff] %v178
  %205 = vst [vmem:[%s3 + $0x50] sm:$0xff] %v181
  %206 = vst [vmem:[%s3 + $0x58] sm:$0xff] %v183
  %207 = vst [vmem:[%s3 + $0x60] sm:$0xff] %v186
  %208 = vst [vmem:[%s3 + $0x68] sm:$0xff] %v188
  %209 = vst [vmem:[%s3 + $0x70] sm:$0xff] %v191
  %210 = vst [vmem:[%s3 + $0x78] sm:$0xff] %v193
  // Predicated region
  $region14: #{matmul_bias_act.1} parent=0 // pred_check
    _
  $region15: #{matmul_bias_act.1} parent=0 // pred_check_branch
    %212 = sbr.rel (0) target = $region17
  $region16: #{matmul_bias_act.1} parent=0 // pred_region
    _
  $region17: #{matmul_bias_act.1} parent=0 // pred_fallthru
    _
  // Predicated region
  $region18: #{matmul_bias_act.1} parent=0 // pred_check
    _
  $region19: #{matmul_bias_act.1} parent=0 // pred_check_branch
    %214 = sbr.rel (0) target = $region21
  $region20: #{matmul_bias_act.1} parent=0 // pred_region
    _
  $region21: #{matmul_bias_act.1} parent=0 // pred_fallthru
    _

</llo_original>
